<compile_context>
chip_gen: v5e
topology: v5e:2x2
jax: 0.10.0
libtpu: 0.0.40
codegen_flags: <defaults>
</compile_context>

<pallas_src>
import functools

import jax
import jax.numpy as jnp
from jax.experimental import pallas as pl
from jax.experimental.pallas import tpu as pltpu

_LANE = 128
_SUBLANE = 8

_VMEM_TARGET = 32 * 1024 * 1024   # budget for 2x input blocks + f32 temporaries
_VMEM_LIMIT = 48 * 1024 * 1024    # < v7x 64 MiB physical, > v5e/v6e scoped defaults
_TEMP_BYTES_PER_ELEM = 32         # f32 accumulators, abs-diff transients, f32 mask


def _round_up(x, m):
    return ((x + m - 1) // m) * m


def _round_down(x, m):
    return (x // m) * m


def _cdiv(a, b):
    return (a + b - 1) // b


def _recon_stats_kernel(imgs_ref, coarse_ref, recon_ref, masks_ref, out_ref, *,
                        C, HW, chunk, flat_channels, need_tail_mask):
    """Partial sums for one (batch-block, spatial-chunk) tile.

    out_ref block: (1, nb, 8) with columns [t_r, t_c, s_rm, s_cm, mask_sum, 0, 0, 0]
      t_r  = sum |imgs - recon|         (all channels, this chunk)
      t_c  = sum |imgs - coarse|
      s_rm = sum |imgs - recon| * mask
      s_cm = sum |imgs - coarse| * mask
    """
    mask = masks_ref[...].astype(jnp.float32)           # (nb, chunk)
    acc_r = jnp.zeros(mask.shape, jnp.float32)
    acc_c = jnp.zeros(mask.shape, jnp.float32)

    # Short static channel loop: diffs in the input dtype, f32 accumulation.
    # Keeps only two (nb, chunk) f32 accumulators live (no (nb, C, chunk) temps).
    for c in range(C):
        if flat_channels:
            sl = pl.ds(c * HW, HW)                      # lane-aligned (HW % 128 == 0)
            img = imgs_ref[:, sl]
            rec = recon_ref[:, sl]
            crs = coarse_ref[:, sl]
        else:
            img = imgs_ref[:, c, :]
            rec = recon_ref[:, c, :]
            crs = coarse_ref[:, c, :]
        acc_r = acc_r + jnp.abs(img - rec).astype(jnp.float32)
        acc_c = acc_c + jnp.abs(img - crs).astype(jnp.float32)

    if need_tail_mask:
        # Tail spatial chunk: zero lanes past HW so partial-block garbage never
        # reaches the reductions.
        h = pl.program_id(1)
        lane = jax.lax.broadcasted_iota(jnp.int32, mask.shape, 1)
        valid = ((lane + h * chunk) < HW).astype(jnp.float32)
        acc_r = acc_r * valid
        acc_c = acc_c * valid
        mask = mask * valid

    t_r = jnp.sum(acc_r, axis=-1, keepdims=True)        # (nb, 1)
    t_c = jnp.sum(acc_c, axis=-1, keepdims=True)
    s_rm = jnp.sum(acc_r * mask, axis=-1, keepdims=True)
    s_cm = jnp.sum(acc_c * mask, axis=-1, keepdims=True)
    msum = jnp.sum(mask, axis=-1, keepdims=True)
    zeros = jnp.zeros_like(t_r)
    stats = jnp.concatenate([t_r, t_c, s_rm, s_cm, msum, zeros, zeros, zeros],
                            axis=-1)                     # (nb, 8)
    out_ref[0] = stats                                   # one store per grid step


def recon_loss_pallas(imgs, coarse_imgs, recon_imgs, masks, *,
                      chole_alpha, cunhole_alpha, rhole_alpha, runhole_alpha):
    N, C, H, W = imgs.shape
    assert coarse_imgs.shape == imgs.shape and recon_imgs.shape == imgs.shape
    assert masks.shape == (N, 1, H, W)
    HW = H * W

    isz = imgs.dtype.itemsize
    misz = masks.dtype.itemsize

    # ---- VMEM bytes per (sample, spatial element) for each layout --------
    # 2x for double-buffered input blocks + in-kernel f32 temporaries.
    # 3D blocks pad C up to the sublane tile (8 for 4B dtypes, 16 for 2B, ...).
    sub = max(1, 32 // isz)
    c_pad = _round_up(C, sub)
    per_elem_flat = 2 * (3 * C * isz + misz) + _TEMP_BYTES_PER_ELEM
    per_elem_3d = 2 * (3 * c_pad * isz + misz) + _TEMP_BYTES_PER_ELEM

    flat_ok = (HW % _LANE == 0)
    nb_fit_flat = (_VMEM_TARGET // (per_elem_flat * HW)) if flat_ok else 0
    nb_fit_3d = _VMEM_TARGET // (per_elem_3d * HW)

    flat_channels = False
    need_tail_mask = False
    nb = chunk = None

    def _whole_spatial_nb(nb_fit):
        # nb must be a multiple of 8 (N >= 8) or equal to N (tile-shape rule);
        # aim for >= ~4 batch blocks so the grid pipelines / splits across TCs.
        if N >= _SUBLANE:
            if nb_fit < _SUBLANE:
                return None
            nb_want = max(_SUBLANE, _round_down(_cdiv(N, 4), _SUBLANE))
            return max(_SUBLANE, min(_round_down(nb_fit, _SUBLANE), nb_want,
                                     max(_SUBLANE, _round_down(N, _SUBLANE))))
        return N if nb_fit >= N else None

    # ---- whole-spatial paths (chunk == HW) --------------------------------
    if flat_ok:
        cand = _whole_spatial_nb(nb_fit_flat)
        if cand is not None:
            nb, chunk, flat_channels = cand, HW, True
    if nb is None:
        cand = _whole_spatial_nb(nb_fit_3d)
        if cand is not None:
            nb, chunk, flat_channels = cand, HW, False

    # Grid-collapse guard: a (1, 1) grid has no pipelining and idles one v7x
    # TensorCore; fall through to the spatially-chunked path instead.
    if nb is not None and _cdiv(N, nb) == 1 and HW >= 8 * _LANE:
        nb = None

    # ---- spatially-chunked 3D path ----------------------------------------
    if nb is None:
        flat_channels = False
        nb = _SUBLANE if N >= _SUBLANE else N
        elems_max = max(_LANE, _VMEM_TARGET // per_elem_3d)
        chunk_cap = max(_LANE, _round_down(elems_max // max(nb, 1), _LANE))
        if chunk_cap >= HW:
            # Reached via the grid-collapse guard: force >= 2 spatial chunks.
            chunk_cap = max(_LANE, _round_down(HW // 2, _LANE))
        # Prefer a multiple-of-128 divisor of HW (no tail mask, no dead lanes),
        # as long as it keeps at least half the budgeted chunk size.
        chunk = None
        cand = chunk_cap
        while cand >= max(_LANE, chunk_cap // 2):
            if HW % cand == 0:
                chunk = cand
                break
            cand -= _LANE
        if chunk is None:
            chunk = chunk_cap
        need_tail_mask = (HW % chunk != 0)

    grid_b = _cdiv(N, nb)
    grid_h = _cdiv(HW, chunk)
    n_out = grid_b * nb  # output rows padded so output blocks are never OOB

    # ---- layout (all reshapes are free / contiguous; no jnp.pad) ----------
    masks_in = masks.reshape(N, HW)
    if flat_channels:
        imgs_in = imgs.reshape(N, C * HW)
        coarse_in = coarse_imgs.reshape(N, C * HW)
        recon_in = recon_imgs.reshape(N, C * HW)
        img_spec = pl.BlockSpec((nb, C * HW), lambda b, h: (b, 0))
    else:
        imgs_in = imgs.reshape(N, C, HW)
        coarse_in = coarse_imgs.reshape(N, C, HW)
        recon_in = recon_imgs.reshape(N, C, HW)
        img_spec = pl.BlockSpec((nb, C, chunk), lambda b, h: (b, 0, h))
    mask_spec = pl.BlockSpec((nb, chunk), lambda b, h: (b, h))
    out_spec = pl.BlockSpec((1, nb, 8), lambda b, h: (h, b, 0))

    kernel = functools.partial(
        _recon_stats_kernel, C=C, HW=HW, chunk=chunk,
        flat_channels=flat_channels, need_tail_mask=need_tail_mask)

    stats = pl.pallas_call(
        kernel,
        out_shape=jax.ShapeDtypeStruct((grid_h, n_out, 8), jnp.float32),
        grid_spec=pltpu.PrefetchScalarGridSpec(
            num_scalar_prefetch=0,
            grid=(grid_b, grid_h),
            in_specs=[img_spec, img_spec, img_spec, mask_spec],
            out_specs=out_spec,
        ),
        compiler_params=pltpu.CompilerParams(
            dimension_semantics=("parallel", "parallel"),
            vmem_limit_bytes=_VMEM_LIMIT,
        ),
        cost_estimate=pl.CostEstimate(
            flops=6 * N * C * HW + 5 * N * HW,
            transcendentals=0,
            bytes_accessed=N * HW * (3 * C * isz + misz) + grid_h * n_out * 8 * 4,
        ),
    )(imgs_in, coarse_in, recon_in, masks_in)

    # ---- tiny per-sample finalization on (N,) vectors ----------------------
    stats = jnp.sum(stats, axis=0)[:N]      # (N, 8); padded/garbage rows dropped
    t_r = stats[:, 0]
    t_c = stats[:, 1]
    s_rm = stats[:, 2]
    s_cm = stats[:, 3]
    msum = stats[:, 4]

    mm = msum / jnp.float32(HW)             # per-sample mask mean (1-channel masks)
    inv_mm = 1.0 / mm                       # NOTE: mm == 0 or 1 -> inf/nan, same as reference
    inv_um = 1.0 / (1.0 - mm)
    s_ru = t_r - s_rm                       # un-hole sums via total - hole
    s_cu = t_c - s_cm

    total_count = jnp.float32(N * C * HW)
    loss = jnp.sum((float(rhole_alpha) * s_rm + float(chole_alpha) * s_cm) * inv_mm
                   + (float(runhole_alpha) * s_ru + float(cunhole_alpha) * s_cu) * inv_um)
    return loss / total_count


def recon_loss_ref(imgs, coarse_imgs, recon_imgs, masks, *,
                   chole_alpha, cunhole_alpha, rhole_alpha, runhole_alpha):
    """Pure-JAX reference mirroring the PyTorch forward exactly."""
    N = masks.shape[0]
    mm = jnp.mean(masks.reshape(N, -1), axis=1).reshape(-1, 1, 1, 1)
    t1 = rhole_alpha * jnp.mean(jnp.abs(imgs - recon_imgs) * masks / mm)
    t2 = runhole_alpha * jnp.mean(jnp.abs(imgs - recon_imgs) * (1.0 - masks) / (1.0 - mm))
    t3 = chole_alpha * jnp.mean(jnp.abs(imgs - coarse_imgs) * masks / mm)
    t4 = cunhole_alpha * jnp.mean(jnp.abs(imgs - coarse_imgs) * (1.0 - masks) / (1.0 - mm))
    return t1 + t2 + t3 + t4


if __name__ == "__main__":
    # Deterministic alphas (module __init__ hyperparameters).
    chole_alpha, cunhole_alpha, rhole_alpha, runhole_alpha = 1.2, 1.2, 1.4, 1.4

    # Small synthetic inputs: batch=2, channels=4, spatial=16x16.
    N, C, H, W = 2, 4, 16, 16
    key = jax.random.PRNGKey(0)
    k1, k2, k3, k4 = jax.random.split(key, 4)
    imgs = jax.random.normal(k1, (N, C, H, W), dtype=jnp.float32)
    coarse_imgs = jax.random.normal(k2, (N, C, H, W), dtype=jnp.float32)
    recon_imgs = jax.random.normal(k3, (N, C, H, W), dtype=jnp.float32)
    masks = jax.random.bernoulli(k4, 0.4, (N, 1, H, W)).astype(jnp.float32)

    loss = recon_loss_pallas(
        imgs, coarse_imgs, recon_imgs, masks,
        chole_alpha=chole_alpha, cunhole_alpha=cunhole_alpha,
        rhole_alpha=rhole_alpha, runhole_alpha=runhole_alpha)
    loss = jax.block_until_ready(loss)

    ref = recon_loss_ref(
        imgs, coarse_imgs, recon_imgs, masks,
        chole_alpha=chole_alpha, cunhole_alpha=cunhole_alpha,
        rhole_alpha=rhole_alpha, runhole_alpha=runhole_alpha)
    ref = jax.block_until_ready(ref)

    assert jnp.allclose(loss, ref, rtol=1e-5, atol=1e-5), (loss, ref)
    print("KERNEL_OK")
</pallas_src>

<mosaic_0001>
module attributes {stable_mosaic.version = 11 : i64} {
  func.func @_recon_stats_kernel(%arg0: i32, %arg1: i32, %arg2: memref<2x1024xf32, #tpu.memory_space<vmem>>, %arg3: memref<2x1024xf32, #tpu.memory_space<vmem>>, %arg4: memref<2x1024xf32, #tpu.memory_space<vmem>>, %arg5: memref<2x256xf32, #tpu.memory_space<vmem>>, %arg6: memref<1x2x8xf32, #tpu.memory_space<vmem>>) attributes {dimension_semantics = [#tpu.dimension_semantics<parallel>, #tpu.dimension_semantics<parallel>], iteration_bounds = array<i64: 1, 1>, scalar_prefetch = 0 : i64, scratch_operands = 0 : i64, tpu.core_type = #tpu.core_type<tc>, window_params = [{transform_indices = @transform_0, window_bounds = array<i64: 2, 1024>}, {transform_indices = @transform_1, window_bounds = array<i64: 2, 1024>}, {transform_indices = @transform_2, window_bounds = array<i64: 2, 1024>}, {transform_indices = @transform_3, window_bounds = array<i64: 2, 256>}, {transform_indices = @transform_4, window_bounds = array<i64: 1, 2, 8>}]} {
    %c0 = arith.constant 0 : index
    %c0_0 = arith.constant 0 : index
    %0 = vector.load %arg5[%c0, %c0_0] : memref<2x256xf32, #tpu.memory_space<vmem>>, vector<2x256xf32>
    %cst = arith.constant 0.000000e+00 : f32
    %1 = vector.broadcast %cst : f32 to vector<2x256xf32>
    %cst_1 = arith.constant 0.000000e+00 : f32
    %2 = vector.broadcast %cst_1 : f32 to vector<2x256xf32>
    %c0_2 = arith.constant 0 : index
    %c0_3 = arith.constant 0 : index
    %3 = vector.load %arg2[%c0_2, %c0_3] : memref<2x1024xf32, #tpu.memory_space<vmem>>, vector<2x256xf32>
    %c0_4 = arith.constant 0 : index
    %c0_5 = arith.constant 0 : index
    %4 = vector.load %arg4[%c0_4, %c0_5] : memref<2x1024xf32, #tpu.memory_space<vmem>>, vector<2x256xf32>
    %c0_6 = arith.constant 0 : index
    %c0_7 = arith.constant 0 : index
    %5 = vector.load %arg3[%c0_6, %c0_7] : memref<2x1024xf32, #tpu.memory_space<vmem>>, vector<2x256xf32>
    %6 = arith.subf %3, %4 : vector<2x256xf32>
    %7 = math.absf %6 : vector<2x256xf32>
    %8 = arith.addf %1, %7 : vector<2x256xf32>
    %9 = arith.subf %3, %5 : vector<2x256xf32>
    %10 = math.absf %9 : vector<2x256xf32>
    %11 = arith.addf %2, %10 : vector<2x256xf32>
    %c0_8 = arith.constant 0 : index
    %c256 = arith.constant 256 : index
    %12 = vector.load %arg2[%c0_8, %c256] : memref<2x1024xf32, #tpu.memory_space<vmem>>, vector<2x256xf32>
    %c0_9 = arith.constant 0 : index
    %c256_10 = arith.constant 256 : index
    %13 = vector.load %arg4[%c0_9, %c256_10] : memref<2x1024xf32, #tpu.memory_space<vmem>>, vector<2x256xf32>
    %c0_11 = arith.constant 0 : index
    %c256_12 = arith.constant 256 : index
    %14 = vector.load %arg3[%c0_11, %c256_12] : memref<2x1024xf32, #tpu.memory_space<vmem>>, vector<2x256xf32>
    %15 = arith.subf %12, %13 : vector<2x256xf32>
    %16 = math.absf %15 : vector<2x256xf32>
    %17 = arith.addf %8, %16 : vector<2x256xf32>
    %18 = arith.subf %12, %14 : vector<2x256xf32>
    %19 = math.absf %18 : vector<2x256xf32>
    %20 = arith.addf %11, %19 : vector<2x256xf32>
    %c0_13 = arith.constant 0 : index
    %c512 = arith.constant 512 : index
    %21 = vector.load %arg2[%c0_13, %c512] : memref<2x1024xf32, #tpu.memory_space<vmem>>, vector<2x256xf32>
    %c0_14 = arith.constant 0 : index
    %c512_15 = arith.constant 512 : index
    %22 = vector.load %arg4[%c0_14, %c512_15] : memref<2x1024xf32, #tpu.memory_space<vmem>>, vector<2x256xf32>
    %c0_16 = arith.constant 0 : index
    %c512_17 = arith.constant 512 : index
    %23 = vector.load %arg3[%c0_16, %c512_17] : memref<2x1024xf32, #tpu.memory_space<vmem>>, vector<2x256xf32>
    %24 = arith.subf %21, %22 : vector<2x256xf32>
    %25 = math.absf %24 : vector<2x256xf32>
    %26 = arith.addf %17, %25 : vector<2x256xf32>
    %27 = arith.subf %21, %23 : vector<2x256xf32>
    %28 = math.absf %27 : vector<2x256xf32>
    %29 = arith.addf %20, %28 : vector<2x256xf32>
    %c0_18 = arith.constant 0 : index
    %c768 = arith.constant 768 : index
    %30 = vector.load %arg2[%c0_18, %c768] : memref<2x1024xf32, #tpu.memory_space<vmem>>, vector<2x256xf32>
    %c0_19 = arith.constant 0 : index
    %c768_20 = arith.constant 768 : index
    %31 = vector.load %arg4[%c0_19, %c768_20] : memref<2x1024xf32, #tpu.memory_space<vmem>>, vector<2x256xf32>
    %c0_21 = arith.constant 0 : index
    %c768_22 = arith.constant 768 : index
    %32 = vector.load %arg3[%c0_21, %c768_22] : memref<2x1024xf32, #tpu.memory_space<vmem>>, vector<2x256xf32>
    %33 = arith.subf %30, %31 : vector<2x256xf32>
    %34 = math.absf %33 : vector<2x256xf32>
    %35 = arith.addf %26, %34 : vector<2x256xf32>
    %36 = arith.subf %30, %32 : vector<2x256xf32>
    %37 = math.absf %36 : vector<2x256xf32>
    %38 = arith.addf %29, %37 : vector<2x256xf32>
    %cst_23 = arith.constant dense<0.000000e+00> : vector<2xf32>
    %39 = vector.multi_reduction <add>, %35, %cst_23 [1] : vector<2x256xf32> to vector<2xf32>
    %40 = vector.shape_cast %39 : vector<2xf32> to vector<2x1xf32>
    %cst_24 = arith.constant dense<0.000000e+00> : vector<2xf32>
    %41 = vector.multi_reduction <add>, %38, %cst_24 [1] : vector<2x256xf32> to vector<2xf32>
    %42 = vector.shape_cast %41 : vector<2xf32> to vector<2x1xf32>
    %43 = arith.mulf %35, %0 : vector<2x256xf32>
    %cst_25 = arith.constant dense<0.000000e+00> : vector<2xf32>
    %44 = vector.multi_reduction <add>, %43, %cst_25 [1] : vector<2x256xf32> to vector<2xf32>
    %45 = vector.shape_cast %44 : vector<2xf32> to vector<2x1xf32>
    %46 = arith.mulf %38, %0 : vector<2x256xf32>
    %cst_26 = arith.constant dense<0.000000e+00> : vector<2xf32>
    %47 = vector.multi_reduction <add>, %46, %cst_26 [1] : vector<2x256xf32> to vector<2xf32>
    %48 = vector.shape_cast %47 : vector<2xf32> to vector<2x1xf32>
    %cst_27 = arith.constant dense<0.000000e+00> : vector<2xf32>
    %49 = vector.multi_reduction <add>, %0, %cst_27 [1] : vector<2x256xf32> to vector<2xf32>
    %50 = vector.shape_cast %49 : vector<2xf32> to vector<2x1xf32>
    %cst_28 = arith.constant 0.000000e+00 : f32
    %51 = vector.broadcast %cst_28 : f32 to vector<2x1xf32>
    %52 = tpu.concatenate %40, %42, %45, %48, %50, %51, %51, %51 in 1 : vector<2x1xf32>, vector<2x1xf32>, vector<2x1xf32>, vector<2x1xf32>, vector<2x1xf32>, vector<2x1xf32>, vector<2x1xf32>, vector<2x1xf32> -> vector<2x8xf32>
    %c0_29 = arith.constant 0 : index
    %c0_30 = arith.constant 0 : index
    %c0_31 = arith.constant 0 : index
    %53 = vector.load %arg6[%c0_29, %c0_30, %c0_31] : memref<1x2x8xf32, #tpu.memory_space<vmem>>, vector<1x2x8xf32>
    %54 = vector.shape_cast %53 : vector<1x2x8xf32> to vector<2x8xf32>
    %55 = vector.shape_cast %52 : vector<2x8xf32> to vector<1x2x8xf32>
    tpu.vector_store %arg6[%c0_29, %c0_30, %c0_31], %55 {strides = array<i32>} : memref<1x2x8xf32, #tpu.memory_space<vmem>>, vector<1x2x8xf32>,
    return
  }
  func.func @transform_0(%arg0: i32, %arg1: i32) -> (i32, i32) {
    %c0_i32 = arith.constant 0 : i32
    %c0_i32_0 = arith.constant 0 : i32
    return %arg0, %c0_i32 : i32, i32
  }
  func.func @transform_1(%arg0: i32, %arg1: i32) -> (i32, i32) {
    %c0_i32 = arith.constant 0 : i32
    %c0_i32_0 = arith.constant 0 : i32
    return %arg0, %c0_i32 : i32, i32
  }
  func.func @transform_2(%arg0: i32, %arg1: i32) -> (i32, i32) {
    %c0_i32 = arith.constant 0 : i32
    %c0_i32_0 = arith.constant 0 : i32
    return %arg0, %c0_i32 : i32, i32
  }
  func.func @transform_3(%arg0: i32, %arg1: i32) -> (i32, i32) {
    %c0_i32 = arith.constant 0 : i32
    return %arg0, %arg1 : i32, i32
  }
  func.func @transform_4(%arg0: i32, %arg1: i32) -> (i32, i32, i32) {
    %c0_i32 = arith.constant 0 : i32
    %c0_i32_0 = arith.constant 0 : i32
    return %arg1, %arg0, %c0_i32 : i32, i32, i32
  }
}

</mosaic_0001>

<llo_original>
// kernel: tpu_custom_call.1
$region0: #{tpu_custom_call.1}
  #allocation0 [shape = 'u32[]', space=smem, size = 0x4, offset = 0x4, fixed_abs, tag = 'smem constant byte address 0x4 - core index']
  #allocation1 [shape = 'u32[72,128]{1,0:T(1,128)}', space=vmem, size = 0x9000, scoped, tag = 'internal scratch']
  %s0 = inlined_call_operand.hbm [shape: f32[2,1024], index: 0, kind: input, shape index: {}]
  %s1 = inlined_call_operand.hbm [shape: f32[2,1024], index: 1, kind: input, shape index: {}]
  %s2 = inlined_call_operand.hbm [shape: f32[2,1024], index: 2, kind: input, shape index: {}]
  %s3 = inlined_call_operand.hbm [shape: f32[2,256], index: 3, kind: input, shape index: {}]
  %s4 = inlined_call_operand.hbm [shape: f32[1,2,8], index: 4, kind: output, shape index: {}]
  %s5 = sld [smem:[#allocation0]]
  $region42: #{tpu_custom_call.1} parent=0
    _
  %s7 = ssub.s32 1, %s5
  %s8 = scalar_select 0, %s7, %s5
  $region1: #{tpu_custom_call.1} parent=0
    #allocation2 [shape = 'u8[8192]{0}', space=vmem, size = 0x2000, scoped, tag = 'input window, operand 0, single buffered']
    #allocation3 [shape = 's32[1]{0}', space=sflag, size = 0x4, scoped, tag = 'scoped memory for tpu_custom_call.1']
    #allocation4 [shape = 's32[1]{0}', space=sflag, size = 0x4, scoped, tag = 'scoped memory for tpu_custom_call.1']
    #allocation5 [shape = 'u8[8192]{0}', space=vmem, size = 0x2000, scoped, tag = 'input window, operand 1, single buffered']
    #allocation6 [shape = 's32[1]{0}', space=sflag, size = 0x4, scoped, tag = 'scoped memory for tpu_custom_call.1']
    #allocation7 [shape = 'u8[8192]{0}', space=vmem, size = 0x2000, scoped, tag = 'input window, operand 2, single buffered']
    #allocation8 [shape = 'u8[2048]{0}', space=vmem, size = 0x800, scoped, tag = 'input window, operand 3, single buffered']
    #allocation9 [shape = 's32[1]{0}', space=sflag, size = 0x4, scoped, tag = 'scoped memory for tpu_custom_call.1']
    #allocation10 [shape = 'u8[1024]{0}', space=vmem, size = 0x400, scoped, tag = 'output window, operand 0, single buffered']
    %9 = vsyncpa [#allocation3], 0
    %10 = vsyncpa [#allocation6], 0
    %11 = vsyncpa [#allocation9], 0
    %12 = vsyncpa [#allocation4], 0
    // Predicated region
    $region2: #{tpu_custom_call.1} parent=1 // pred_check
      _
    $region3: #{tpu_custom_call.1} parent=1 // pred_check_branch
      %14 = sbr.rel (0) target = $region5
    $region4: #{tpu_custom_call.1} parent=1 // pred_region
      %16 = vsyncadd [#allocation3], 0
      %s18 = sshll.u32 %s0, 4
      %s19 = int_to_ptr.hbm [resolvable:$true] %s18
      %s20 = sshll.u32 [#allocation2], 4
      %s21 = int_to_ptr.vmem [resolvable:$true] %s20
      %23 = dma.hbm_to_vmem [thread:$0]  %s19, 256, %s21, [#allocation3]
    $region5: #{tpu_custom_call.1} parent=1 // pred_fallthru
      _
    // Predicated region
    $region6: #{tpu_custom_call.1} parent=1 // pred_check
      _
    $region7: #{tpu_custom_call.1} parent=1 // pred_check_branch
      %25 = sbr.rel (0) target = $region9
    $region8: #{tpu_custom_call.1} parent=1 // pred_region
      %27 = vsyncadd [#allocation6], 0
      %s29 = sshll.u32 %s1, 4
      %s30 = int_to_ptr.hbm [resolvable:$true] %s29
      %s31 = sshll.u32 [#allocation5], 4
      %s32 = int_to_ptr.vmem [resolvable:$true] %s31
      %34 = dma.hbm_to_vmem [thread:$0]  %s30, 256, %s32, [#allocation6]
    $region9: #{tpu_custom_call.1} parent=1 // pred_fallthru
      _
    // Predicated region
    $region10: #{tpu_custom_call.1} parent=1 // pred_check
      _
    $region11: #{tpu_custom_call.1} parent=1 // pred_check_branch
      %36 = sbr.rel (0) target = $region13
    $region12: #{tpu_custom_call.1} parent=1 // pred_region
      %38 = vsyncadd [#allocation6], 0
      %s40 = sshll.u32 %s2, 4
      %s41 = int_to_ptr.hbm [resolvable:$true] %s40
      %s42 = sshll.u32 [#allocation7], 4
      %s43 = int_to_ptr.vmem [resolvable:$true] %s42
      %45 = dma.hbm_to_vmem [thread:$0]  %s41, 256, %s43, [#allocation6]
    $region13: #{tpu_custom_call.1} parent=1 // pred_fallthru
      _
    // Predicated region
    $region14: #{tpu_custom_call.1} parent=1 // pred_check
      _
    $region15: #{tpu_custom_call.1} parent=1 // pred_check_branch
      %47 = sbr.rel (0) target = $region17
    $region16: #{tpu_custom_call.1} parent=1 // pred_region
      %49 = vsyncadd [#allocation9], 0
      %s51 = sshll.u32 %s3, 4
      %s52 = int_to_ptr.hbm [resolvable:$true] %s51
      %s53 = sshll.u32 [#allocation8], 4
      %s54 = int_to_ptr.vmem [resolvable:$true] %s53
      %56 = dma.hbm_to_vmem [thread:$0]  %s52, 64, %s54, [#allocation9]
    $region17: #{tpu_custom_call.1} parent=1 // pred_fallthru
      _
    // Predicated region
    $region18: #{tpu_custom_call.1} parent=1 // pred_check
      _
    $region19: #{tpu_custom_call.1} parent=1 // pred_check_branch
      %58 = sbr.rel (0) target = $region21
    $region20: #{tpu_custom_call.1} parent=1 // pred_region
      %60 = dma.done [#allocation3], 256
    $region21: #{tpu_custom_call.1} parent=1 // pred_fallthru
      _
    // Predicated region
    $region22: #{tpu_custom_call.1} parent=1 // pred_check
      _
    $region23: #{tpu_custom_call.1} parent=1 // pred_check_branch
      %62 = sbr.rel (0) target = $region25
    $region24: #{tpu_custom_call.1} parent=1 // pred_region
      %64 = dma.done [#allocation6], 256
    $region25: #{tpu_custom_call.1} parent=1 // pred_fallthru
      _
    // Predicated region
    $region26: #{tpu_custom_call.1} parent=1 // pred_check
      _
    $region27: #{tpu_custom_call.1} parent=1 // pred_check_branch
      %66 = sbr.rel (0) target = $region29
    $region28: #{tpu_custom_call.1} parent=1 // pred_region
      %68 = dma.done [#allocation6], 256
    $region29: #{tpu_custom_call.1} parent=1 // pred_fallthru
      _
    // Predicated region
    $region30: #{tpu_custom_call.1} parent=1 // pred_check
      _
    $region31: #{tpu_custom_call.1} parent=1 // pred_check_branch
      %70 = sbr.rel (0) target = $region33
    $region32: #{tpu_custom_call.1} parent=1 // pred_region
      %72 = dma.done [#allocation9], 64
    $region33: #{tpu_custom_call.1} parent=1 // pred_fallthru
      _
    %v73 = vld [vmem:[#allocation8] sm:$0xf]
    %v74 = vld [vmem:[#allocation2] sm:$0xf]
    %v75 = vld [vmem:[#allocation7] sm:$0xf]
    %v76 = vld [vmem:[#allocation5] sm:$0xf]
    %v77 = vsub.f32 %v74, %v75
    %v78 = vand.u32 2147483647, %v77
    %v79 = vadd.f32 %v78, 0.0
    %v80 = vsub.f32 %v74, %v76
    %v81 = vand.u32 2147483647, %v80
    %v82 = vadd.f32 %v81, 0.0
    %v83 = vld [vmem:[#allocation2 + $0x4] sm:$0xf]
    %v84 = vld [vmem:[#allocation7 + $0x4] sm:$0xf]
    %v85 = vld [vmem:[#allocation5 + $0x4] sm:$0xf]
    %v86 = vsub.f32 %v83, %v84
    %v87 = vand.u32 2147483647, %v86
    %v88 = vadd.f32 %v79, %v87
    %v89 = vsub.f32 %v83, %v85
    %v90 = vand.u32 2147483647, %v89
    %v91 = vadd.f32 %v82, %v90
    %v92 = vld [vmem:[#allocation2 + $0x8] sm:$0xf]
    %v93 = vld [vmem:[#allocation7 + $0x8] sm:$0xf]
    %v94 = vld [vmem:[#allocation5 + $0x8] sm:$0xf]
    %v95 = vsub.f32 %v92, %v93
    %v96 = vand.u32 2147483647, %v95
    %v97 = vadd.f32 %v88, %v96
    %v98 = vsub.f32 %v92, %v94
    %v99 = vand.u32 2147483647, %v98
    %v100 = vadd.f32 %v91, %v99
    %v101 = vld [vmem:[#allocation2 + $0xc] sm:$0xf]
    %v102 = vld [vmem:[#allocation7 + $0xc] sm:$0xf]
    %v103 = vld [vmem:[#allocation5 + $0xc] sm:$0xf]
    %v104 = vsub.f32 %v101, %v102
    %v105 = vand.u32 2147483647, %v104
    %v106 = vadd.f32 %v97, %v105
    %v107 = vsub.f32 %v101, %v103
    %v108 = vand.u32 2147483647, %v107
    %v109 = vadd.f32 %v100, %v108
    %111 = vst [vmem:[#allocation1] ss:$4 sm:$0xff] %v106
    %v112 = vld.sshfl [vmem:[#allocation1] sm:$0xff pattern:$0x73625140]
    %v113 = vld.sshfl [vmem:[#allocation1 + $0x8] sm:$0xff pattern:$0x73625140]
    %vm116 = vcmask 1041408
    %v117 = vsel %vm116, %v112, 0.0
    %v118 = vsel %vm116, %v113, 0.0
    %v119 = vadd.f32 %v117, %v118
    %120 = vadd.xlane.f32.xlu0 %v119
    %v121 = vpop.xlane.xlu0 %120
    %123 = vst [vmem:[#allocation1] ss:$4 sm:$0xff] %v109
    %v124 = vld.sshfl [vmem:[#allocation1] sm:$0xff pattern:$0x73625140]
    %v125 = vld.sshfl [vmem:[#allocation1 + $0x8] sm:$0xff pattern:$0x73625140]
    %v128 = vsel %vm116, %v124, 0.0
    %v129 = vsel %vm116, %v125, 0.0
    %v130 = vadd.f32 %v128, %v129
    %131 = vadd.xlane.f32.xlu0 %v130
    %v132 = vpop.xlane.xlu0 %131
    %v133 = vmul.f32 %v106, %v73
    %135 = vst [vmem:[#allocation1] ss:$4 sm:$0xff] %v133
    %v136 = vld.sshfl [vmem:[#allocation1] sm:$0xff pattern:$0x73625140]
    %v137 = vld.sshfl [vmem:[#allocation1 + $0x8] sm:$0xff pattern:$0x73625140]
    %v140 = vsel %vm116, %v136, 0.0
    %v141 = vsel %vm116, %v137, 0.0
    %v142 = vadd.f32 %v140, %v141
    %143 = vadd.xlane.f32.xlu0 %v142
    %v144 = vpop.xlane.xlu0 %143
    %v145 = vmul.f32 %v109, %v73
    %147 = vst [vmem:[#allocation1] ss:$4 sm:$0xff] %v145
    %v148 = vld.sshfl [vmem:[#allocation1] sm:$0xff pattern:$0x73625140]
    %v149 = vld.sshfl [vmem:[#allocation1 + $0x8] sm:$0xff pattern:$0x73625140]
    %v152 = vsel %vm116, %v148, 0.0
    %v153 = vsel %vm116, %v149, 0.0
    %v154 = vadd.f32 %v152, %v153
    %155 = vadd.xlane.f32.xlu0 %v154
    %v156 = vpop.xlane.xlu0 %155
    %158 = vst [vmem:[#allocation1] ss:$4 sm:$0xff] %v73
    %v159 = vld.sshfl [vmem:[#allocation1] sm:$0xff pattern:$0x73625140]
    %v160 = vld.sshfl [vmem:[#allocation1 + $0x8] sm:$0xff pattern:$0x73625140]
    %v163 = vsel %vm116, %v159, 0.0
    %v164 = vsel %vm116, %v160, 0.0
    %v165 = vadd.f32 %v163, %v164
    %166 = vadd.xlane.f32.xlu0 %v165
    %v167 = vpop.xlane.xlu0 %166
    %vm168 = vcmask 7168
    %v169 = vsel %vm168, %v121, %v132
    %vm170 = vcmask 15360
    %v171 = vsel %vm170, %v169, %v144
    %vm172 = vcmask 23552
    %v173 = vsel %vm172, %v171, %v156
    %vm174 = vcmask 31744
    %v175 = vsel %vm174, %v173, %v167
    %vm176 = vcmask 39936
    %v177 = vsel %vm176, %v175, 0.0
    %vm178 = vcmask 48128
    %v179 = vsel %vm178, %v177, 0.0
    %vm180 = vcmask 56320
    %v181 = vsel %vm180, %v179, 0.0
    %vm182 = vcmask 58368
    %183 = vst.msk [vmem:[#allocation10] sm:$0x3] %vm182, %v181
    // Predicated region
    $region34: #{tpu_custom_call.1} parent=1 // pred_check
      _
    $region35: #{tpu_custom_call.1} parent=1 // pred_check_branch
      %185 = sbr.rel (0) target = $region37
    $region36: #{tpu_custom_call.1} parent=1 // pred_region
      %187 = vsyncadd [#allocation4], 0
      %s189 = sshll.u32 [#allocation10], 4
      %s190 = int_to_ptr.vmem [resolvable:$true] %s189
      %s191 = sshll.u32 %s4, 4
      %s192 = int_to_ptr.hbm [resolvable:$true] %s191
      %194 = dma.vmem_to_hbm [thread:$0]  %s190, 32, %s192, [#allocation4]
    $region37: #{tpu_custom_call.1} parent=1 // pred_fallthru
      _
    // Predicated region
    $region38: #{tpu_custom_call.1} parent=1 // pred_check
      _
    $region39: #{tpu_custom_call.1} parent=1 // pred_check_branch
      %196 = sbr.rel (0) target = $region41
    $region40: #{tpu_custom_call.1} parent=1 // pred_region
      %198 = dma.done [#allocation4], 32
    $region41: #{tpu_custom_call.1} parent=1 // pred_fallthru
      _
    %199 = vsyncpa [#allocation3], 1
    %200 = vsyncpa [#allocation6], 1
    %201 = vsyncpa [#allocation9], 1
    %202 = vsyncpa [#allocation4], 1

</llo_original>
